<compile_context>
chip_gen: v7x
topology: tpu7x:2x2x1
jax: 0.10.0
libtpu: 0.0.40
codegen_flags: <defaults>
</compile_context>

<pallas_src>
import jax
import jax.numpy as jnp
from jax.experimental import pallas as pl
from jax.experimental.pallas import tpu as pltpu


def _replicate_kernel(x_ref, o_ref):
    # x_ref: (1, TR, LANE) tile of the flattened grayscale image
    # o_ref: (3, TR, LANE) tile of the flattened RGB output
    o_ref[...] = jnp.broadcast_to(x_ref[...], o_ref.shape)


def grayscale_to_rgb(x: jax.Array) -> jax.Array:
    """x: (C, H, W) image -> (3*C, H, W), channel-tiled (torch .repeat(3,1,1))."""
    assert x.ndim == 3, "expected CHW input"
    c, h, w = x.shape
    n = c * h * w
    itemsize = jnp.dtype(x.dtype).itemsize

    # --- choose a lane-dense tiling of the flat buffer -----------------------
    # Last dim: multiple of 128, up to 1024 lanes (lane-dense unmasked stores).
    lane = 128 * max(1, min(8, pl.cdiv(n, 128)))
    rows = pl.cdiv(n, lane)

    # Sublane multiple for the dtype (f32: 8, bf16/f16: 16, int8/u8/fp8: 32).
    sub = {4: 8, 2: 16, 1: 32}.get(itemsize, 8)

    # Rows per tile: target ~2 MiB for the (3, TR, LANE) output block so that
    # (in + out) * 2 pipeline buffers stays well under scoped VMEM on all chips
    # (incl. v7x's smaller 64 MiB physical / 32 MiB scoped budget).
    target_rows = max(sub, ((2 << 20) // (3 * lane * itemsize)) // sub * sub)
    tile_rows = min(target_rows, pl.cdiv(rows, sub) * sub)

    rows_pad = pl.cdiv(rows, tile_rows) * tile_rows
    n_pad = rows_pad * lane

    # --- layout plumbing (contiguous reshape; pad only if needed) ------------
    x_flat = x.reshape(1, n)
    if n_pad != n:
        x_flat = jnp.pad(x_flat, ((0, 0), (0, n_pad - n)))
    x_view = x_flat.reshape(1, rows_pad, lane)

    grid = (rows_pad // tile_rows,)

    out = pl.pallas_call(
        _replicate_kernel,
        out_shape=jax.ShapeDtypeStruct((3, rows_pad, lane), x.dtype),
        grid_spec=pltpu.PrefetchScalarGridSpec(
            num_scalar_prefetch=0,
            grid=grid,
            in_specs=[
                pl.BlockSpec((1, tile_rows, lane), lambda i: (0, i, 0)),
            ],
            out_specs=pl.BlockSpec((3, tile_rows, lane), lambda i: (0, i, 0)),
        ),
        compiler_params=pltpu.CompilerParams(
            dimension_semantics=("parallel",),
        ),
        # Pure copy: 1 read + 3 writes of the image, zero flops.
        cost_estimate=pl.CostEstimate(
            flops=0, transcendentals=0, bytes_accessed=4 * n * itemsize
        ),
    )(x_view)

    # Undo the layout plumbing: (3, rows_pad, lane) -> (3, n) -> (3*C, H, W).
    return out.reshape(3, n_pad)[:, :n].reshape(3 * c, h, w)


if __name__ == "__main__":
    key = jax.random.PRNGKey(0)
    k0, k1 = jax.random.split(key)

    # Case 1: small grayscale image (1, 16, 16), CHW layout.
    x0 = jax.random.normal(k0, (1, 16, 16), dtype=jnp.float32)
    out0 = jax.block_until_ready(grayscale_to_rgb(x0))
    ref0 = jnp.tile(x0, (3, 1, 1))
    assert out0.shape == (3, 16, 16), out0.shape
    assert out0.dtype == x0.dtype
    assert jnp.array_equal(out0, ref0), "mismatch vs reference (16x16)"

    # Case 2: odd, non-(8,128)-aligned spatial shape exercises the pad path.
    x1 = jax.random.normal(k1, (1, 24, 40), dtype=jnp.float32)
    out1 = jax.block_until_ready(grayscale_to_rgb(x1))
    ref1 = jnp.tile(x1, (3, 1, 1))
    assert out1.shape == (3, 24, 40), out1.shape
    assert jnp.array_equal(out1, ref1), "mismatch vs reference (24x40)"

    print("KERNEL_OK")
</pallas_src>

<mosaic_0001>
module attributes {stable_mosaic.version = 11 : i64} {
  func.func @_replicate_kernel(%arg0: i32, %arg1: memref<1x8x256xf32, #tpu.memory_space<vmem>>, %arg2: memref<3x8x256xf32, #tpu.memory_space<vmem>>) attributes {dimension_semantics = [#tpu.dimension_semantics<parallel>], iteration_bounds = array<i64: 1>, scalar_prefetch = 0 : i64, scratch_operands = 0 : i64, tpu.core_type = #tpu.core_type<tc>, window_params = [{transform_indices = @transform_0, window_bounds = array<i64: 1, 8, 256>}, {transform_indices = @transform_1, window_bounds = array<i64: 3, 8, 256>}]} {
    %c0 = arith.constant 0 : index
    %c0_0 = arith.constant 0 : index
    %c0_1 = arith.constant 0 : index
    %0 = vector.load %arg1[%c0, %c0_0, %c0_1] : memref<1x8x256xf32, #tpu.memory_space<vmem>>, vector<1x8x256xf32>
    %1 = vector.shape_cast %0 : vector<1x8x256xf32> to vector<1x8x256xf32>
    %2 = vector.broadcast %1 : vector<1x8x256xf32> to vector<3x8x256xf32>
    %c0_2 = arith.constant 0 : index
    %c0_3 = arith.constant 0 : index
    %c0_4 = arith.constant 0 : index
    %3 = vector.load %arg2[%c0_2, %c0_3, %c0_4] : memref<3x8x256xf32, #tpu.memory_space<vmem>>, vector<3x8x256xf32>
    tpu.vector_store %arg2[%c0_2, %c0_3, %c0_4], %2 {strides = array<i32>} : memref<3x8x256xf32, #tpu.memory_space<vmem>>, vector<3x8x256xf32>,
    return
  }
  func.func @transform_0(%arg0: i32) -> (i32, i32, i32) {
    %c0_i32 = arith.constant 0 : i32
    %c0_i32_0 = arith.constant 0 : i32
    %c0_i32_1 = arith.constant 0 : i32
    return %c0_i32, %arg0, %c0_i32_0 : i32, i32, i32
  }
  func.func @transform_1(%arg0: i32) -> (i32, i32, i32) {
    %c0_i32 = arith.constant 0 : i32
    %c0_i32_0 = arith.constant 0 : i32
    %c0_i32_1 = arith.constant 0 : i32
    return %c0_i32, %arg0, %c0_i32_0 : i32, i32, i32
  }
}

</mosaic_0001>

<llo_original>
// kernel: tpu_custom_call.1
$region0: #{tpu_custom_call.1}
  #allocation0 [shape = 'u32[]', space=smem, size = 0x4, offset = 0x4, fixed_abs, tag = 'smem constant byte address 0x4 - core index']
  #allocation1 [shape = 'u32[144,128]{1,0:T(1,128)}', space=vmem, size = 0x12000, scoped, tag = 'internal scratch']
  %s0 = inlined_call_operand.hbm [shape: f32[1,8,256], index: 0, kind: input, shape index: {}]
  %s1 = inlined_call_operand.hbm [shape: f32[3,8,256], index: 1, kind: output, shape index: {}]
  %s2 = sld [smem:[#allocation0]]
  $region18: #{tpu_custom_call.1} parent=0
    _
  %s4 = ssub.s32 1, %s2
  %s5 = scalar_select 0, %s4, %s2
  $region1: #{tpu_custom_call.1} parent=0
    #allocation2 [shape = 'u8[8192]{0}', space=vmem, size = 0x2000, scoped, tag = 'input window, operand 0, single buffered']
    #allocation3 [shape = 's32[1]{0}', space=sflag, size = 0x4, scoped, tag = 'scoped memory for tpu_custom_call.1']
    #allocation4 [shape = 's32[1]{0}', space=sflag, size = 0x4, scoped, tag = 'scoped memory for tpu_custom_call.1']
    #allocation5 [shape = 'u8[24576]{0}', space=vmem, size = 0x6000, scoped, tag = 'output window, operand 0, single buffered']
    %6 = vsyncpa [#allocation3], 0
    %7 = vsyncpa [#allocation4], 0
    // Predicated region
    $region2: #{tpu_custom_call.1} parent=1 // pred_check
      _
    $region3: #{tpu_custom_call.1} parent=1 // pred_check_branch
      %9 = sbr.rel (0) target = $region5
    $region4: #{tpu_custom_call.1} parent=1 // pred_region
      %s11 = ssub.s32 256, 256
      %12 = vsyncadd [#allocation3], %s11
      %s14 = sshll.u32 [#allocation2], 4
      %s15 = int_to_ptr.vmem [resolvable:$true] %s14
      %17 = dma.hbm_to_vmem [thread:$0]  %s0, 256, %s15, [#allocation3]
    $region5: #{tpu_custom_call.1} parent=1 // pred_fallthru
      _
    // Predicated region
    $region6: #{tpu_custom_call.1} parent=1 // pred_check
      _
    $region7: #{tpu_custom_call.1} parent=1 // pred_check_branch
      %19 = sbr.rel (0) target = $region9
    $region8: #{tpu_custom_call.1} parent=1 // pred_region
      %20 = dma.done [#allocation3], 256
    $region9: #{tpu_custom_call.1} parent=1 // pred_fallthru
      _
    %v21 = vld [vmem:[#allocation2] sm:$0xff]
    %v22 = vld [vmem:[#allocation2 + $0x8] sm:$0xff]
    %23 = vst [vmem:[#allocation5] sm:$0xff] %v21
    %24 = vst [vmem:[#allocation5 + $0x8] sm:$0xff] %v22
    %25 = vst [vmem:[#allocation5 + $0x10] sm:$0xff] %v21
    %26 = vst [vmem:[#allocation5 + $0x18] sm:$0xff] %v22
    %27 = vst [vmem:[#allocation5 + $0x20] sm:$0xff] %v21
    %28 = vst [vmem:[#allocation5 + $0x28] sm:$0xff] %v22
    // Predicated region
    $region10: #{tpu_custom_call.1} parent=1 // pred_check
      _
    $region11: #{tpu_custom_call.1} parent=1 // pred_check_branch
      %30 = sbr.rel (0) target = $region13
    $region12: #{tpu_custom_call.1} parent=1 // pred_region
      %s32 = ssub.s32 768, 768
      %33 = vsyncadd [#allocation4], %s32
      %s34 = sshll.u32 [#allocation5], 4
      %s35 = int_to_ptr.vmem [resolvable:$true] %s34
      %40 = dma.vmem_to_hbm [thread:$0]  %s35, 768, %s1, [#allocation4], 256, 256, 16
    $region13: #{tpu_custom_call.1} parent=1 // pred_fallthru
      _
    // Predicated region
    $region14: #{tpu_custom_call.1} parent=1 // pred_check
      _
    $region15: #{tpu_custom_call.1} parent=1 // pred_check_branch
      %42 = sbr.rel (0) target = $region17
    $region16: #{tpu_custom_call.1} parent=1 // pred_region
      %43 = dma.done [#allocation4], 768
    $region17: #{tpu_custom_call.1} parent=1 // pred_fallthru
      _
    %44 = vsyncpa [#allocation3], 1
    %45 = vsyncpa [#allocation4], 1

</llo_original>
